<compile_context>
chip_gen: v7x
topology: tpu7x:2x2x1
jax: 0.10.0
libtpu: 0.0.40
codegen_flags: <defaults>
</compile_context>

<pallas_src>
import functools
import math

import jax
import jax.numpy as jnp
from jax.experimental import pallas as pl
from jax.experimental.pallas import tpu as pltpu


def _round_up(x, m):
    return (x + m - 1) // m * m


def _vmem_limit_bytes():
    # Size the scoped-VMEM limit per chip generation (per TensorCore on v7x),
    # leaving ~1/8 headroom.  Falls back to a conservative value that is still
    # above the 16/32 MiB defaults and below v7x's 64 MiB physical VMEM.
    try:
        cap = pltpu.get_tpu_info().vmem_capacity_bytes
        return int(cap * 7 // 8)
    except Exception:
        return 48 * 1024 * 1024


_VMEM_LIMIT_BYTES = _vmem_limit_bytes()


def _attention_kernel(q_ref, k_ref, v_ref, out_ref, attn_ref, *, mxu_dtype,
                      approx_recip):
    # Blocks: q (1, TQ, D), k (1, Lk, D), v (1, Lk, Dv),
    #         out (1, TQ, Dv), attn (1, TQ, Lk)
    q = q_ref[0]          # (TQ, D)
    k = k_ref[0]          # (Lk, D)
    v = v_ref[0]          # (Lk, Dv)

    # Fold 1/sqrt(d_k) into q (touches TQ*D elements, not TQ*Lk), then feed the
    # MXU in `mxu_dtype` (bf16 for the fast path) with f32 accumulation.
    scale = 1.0 / math.sqrt(k.shape[-1])
    q_scaled = (q * scale).astype(mxu_dtype)

    # scores = (q * scale) @ k^T, contraction on the last dims of both operands
    # (no XLU transpose / relayout of the K tile).
    s = jax.lax.dot_general(
        q_scaled, k.astype(mxu_dtype),
        dimension_numbers=(((1,), (1,)), ((), ())),
        preferred_element_type=jnp.float32,
    )  # (TQ, Lk) f32

    # Numerically stable softmax over the last axis (== F.softmax(dim=-1)).
    s_max = jnp.max(s, axis=-1, keepdims=True)
    e = jnp.exp(s - s_max)
    denom = jnp.sum(e, axis=-1, keepdims=True)
    if approx_recip:
        recip = pl.reciprocal(denom, approx=True)   # EUP vrcp; VALU stays free
    else:
        recip = 1.0 / denom                         # exact softmax weights

    # PV matmul on the unnormalized exponentials; normalize the (TQ, Dv) result
    # instead of the (TQ, Lk) probabilities (one fewer TQ*Lk elementwise pass).
    out_unnorm = jnp.dot(
        e.astype(mxu_dtype), v.astype(mxu_dtype),
        preferred_element_type=jnp.float32,
    )  # (TQ, Dv) f32
    out_ref[0] = (out_unnorm * recip).astype(out_ref.dtype)

    # The full attention matrix is returned by the module, so it must be
    # materialized and written back (this writeback dominates at large Lk).
    attn_ref[0] = (e * recip).astype(attn_ref.dtype)


@functools.partial(jax.jit, static_argnames=("tq", "precision"))
def attention(q, k, v, *, tq=128, precision="bf16"):
    """Pallas TPU (attn @ v, softmax(q k^T / sqrt(d_k))).

    precision:
      "bf16"    - bf16 MXU operands, f32 accumulation, approx EUP reciprocal
                  (fast path; ~1e-2-level error on f32 inputs).
      "float32" - keep the input dtype on the MXU and use an exact reciprocal
                  (matches the PyTorch module's f32 numerics).
    """
    B, Lq, D = q.shape
    Bk, Lk, Dk = k.shape
    Bv, Lkv, Dv = v.shape
    assert B == Bk == Bv and D == Dk and Lk == Lkv
    assert precision in ("bf16", "float32")

    # Query tile: multiple of 8 (sublane granularity), capped at Lq.  No array
    # padding — the grid uses cdiv and Pallas masks the ragged last q-tile, so
    # no extra attn rows are written to HBM.
    TQ = min(tq, _round_up(Lq, 8))
    n_q_tiles = pl.cdiv(Lq, TQ)

    mxu_dtype = jnp.bfloat16 if precision == "bf16" else q.dtype
    kernel = functools.partial(_attention_kernel, mxu_dtype=mxu_dtype,
                               approx_recip=(precision == "bf16"))

    out_shapes = (
        jax.ShapeDtypeStruct((B, Lq, Dv), q.dtype),   # output
        jax.ShapeDtypeStruct((B, Lq, Lk), q.dtype),   # attention weights
    )

    grid_spec = pltpu.PrefetchScalarGridSpec(
        num_scalar_prefetch=0,
        # B leading & parallel: v7x's two TCs shard over batch and keep K/V
        # resident per core; qi innermost so K/V blocks are reused across it.
        grid=(B, n_q_tiles),
        in_specs=[
            pl.BlockSpec((1, TQ, D), lambda b, qi: (b, qi, 0)),
            pl.BlockSpec((1, Lk, D), lambda b, qi: (b, 0, 0)),    # K resident per batch
            pl.BlockSpec((1, Lk, Dv), lambda b, qi: (b, 0, 0)),   # V resident per batch
        ],
        out_specs=[
            pl.BlockSpec((1, TQ, Dv), lambda b, qi: (b, qi, 0)),
            pl.BlockSpec((1, TQ, Lk), lambda b, qi: (b, qi, 0)),
        ],
    )

    return pl.pallas_call(
        kernel,
        out_shape=out_shapes,
        grid_spec=grid_spec,
        compiler_params=pltpu.CompilerParams(
            dimension_semantics=("parallel", "parallel"),
            vmem_limit_bytes=_VMEM_LIMIT_BYTES,
        ),
    )(q, k, v)


def _attention_ref(q, k, v):
    d_k = k.shape[-1]
    # HIGHEST precision so the reference is true-f32 (TPU default einsum would
    # itself use bf16 passes and pollute the comparison).
    s = jnp.einsum("bqd,bkd->bqk", q, k,
                   precision=jax.lax.Precision.HIGHEST) / jnp.sqrt(jnp.float32(d_k))
    attn = jax.nn.softmax(s, axis=-1)
    out = jnp.einsum("bqk,bkd->bqd", attn, v,
                     precision=jax.lax.Precision.HIGHEST)
    return out, attn


if __name__ == "__main__":
    key = jax.random.PRNGKey(0)
    kq, kk, kv = jax.random.split(key, 3)
    B, Lq, Lk, D, Dv = 2, 8, 8, 32, 32
    q = jax.random.normal(kq, (B, Lq, D), dtype=jnp.float32)
    k = jax.random.normal(kk, (B, Lk, D), dtype=jnp.float32)
    v = jax.random.normal(kv, (B, Lk, Dv), dtype=jnp.float32)
    ref_out, ref_attn = _attention_ref(q, k, v)

    # Case 1: default fast path (bf16 MXU operands, approx reciprocal).
    # Loose tolerances — bf16-level matmul error is expected on this path.
    out, attn = jax.block_until_ready(attention(q, k, v))
    assert out.shape == ref_out.shape and attn.shape == ref_attn.shape
    assert jnp.allclose(out, ref_out, atol=1.5e-1, rtol=5e-2), "bf16-path output mismatch"
    assert jnp.allclose(attn, ref_attn, atol=3e-2, rtol=5e-2), "bf16-path attn mismatch"

    # Case 2: exact-precision path (module-faithful numerics), tight tolerances.
    out32, attn32 = jax.block_until_ready(attention(q, k, v, precision="float32"))
    assert jnp.allclose(out32, ref_out, atol=1e-3, rtol=1e-3), "f32-path output mismatch"
    assert jnp.allclose(attn32, ref_attn, atol=1e-3, rtol=1e-3), "f32-path attn mismatch"

    # Case 3: ragged q axis (Lq=20, tq=8 -> 3 q-tiles, last one masked by the
    # cdiv grid; no padding / trimming in the wrapper).
    kq2, kk2, kv2 = jax.random.split(jax.random.PRNGKey(1), 3)
    B2, Lq2, Lk2, D2, Dv2 = 1, 20, 16, 32, 48
    q2 = jax.random.normal(kq2, (B2, Lq2, D2), dtype=jnp.float32)
    k2 = jax.random.normal(kk2, (B2, Lk2, D2), dtype=jnp.float32)
    v2 = jax.random.normal(kv2, (B2, Lk2, Dv2), dtype=jnp.float32)

    out2, attn2 = jax.block_until_ready(
        attention(q2, k2, v2, tq=8, precision="float32"))
    ref_out2, ref_attn2 = _attention_ref(q2, k2, v2)
    assert out2.shape == ref_out2.shape and attn2.shape == ref_attn2.shape
    assert jnp.allclose(out2, ref_out2, atol=1e-3, rtol=1e-3), "ragged output mismatch"
    assert jnp.allclose(attn2, ref_attn2, atol=1e-3, rtol=1e-3), "ragged attn mismatch"

    print("KERNEL_OK")
</pallas_src>

<mosaic_0001>
module attributes {stable_mosaic.version = 11 : i64} {
  func.func @_attention_kernel(%arg0: i32, %arg1: i32, %arg2: memref<1x8x32xf32, #tpu.memory_space<vmem>>, %arg3: memref<1x8x32xf32, #tpu.memory_space<vmem>>, %arg4: memref<1x8x32xf32, #tpu.memory_space<vmem>>, %arg5: memref<1x8x32xf32, #tpu.memory_space<vmem>>, %arg6: memref<1x8x8xf32, #tpu.memory_space<vmem>>) attributes {dimension_semantics = [#tpu.dimension_semantics<parallel>, #tpu.dimension_semantics<parallel>], iteration_bounds = array<i64: 2, 1>, scalar_prefetch = 0 : i64, scratch_operands = 0 : i64, tpu.core_type = #tpu.core_type<tc>, window_params = [{transform_indices = @transform_0, window_bounds = array<i64: 1, 8, 32>}, {transform_indices = @transform_1, window_bounds = array<i64: 1, 8, 32>}, {transform_indices = @transform_2, window_bounds = array<i64: 1, 8, 32>}, {transform_indices = @transform_3, window_bounds = array<i64: 1, 8, 32>}, {transform_indices = @transform_4, window_bounds = array<i64: 1, 8, 8>}]} {
    %c0 = arith.constant 0 : index
    %c0_0 = arith.constant 0 : index
    %c0_1 = arith.constant 0 : index
    %0 = vector.load %arg2[%c0, %c0_0, %c0_1] : memref<1x8x32xf32, #tpu.memory_space<vmem>>, vector<1x8x32xf32>
    %1 = vector.shape_cast %0 : vector<1x8x32xf32> to vector<8x32xf32>
    %c0_2 = arith.constant 0 : index
    %c0_3 = arith.constant 0 : index
    %c0_4 = arith.constant 0 : index
    %2 = vector.load %arg3[%c0_2, %c0_3, %c0_4] : memref<1x8x32xf32, #tpu.memory_space<vmem>>, vector<1x8x32xf32>
    %3 = vector.shape_cast %2 : vector<1x8x32xf32> to vector<8x32xf32>
    %c0_5 = arith.constant 0 : index
    %c0_6 = arith.constant 0 : index
    %c0_7 = arith.constant 0 : index
    %4 = vector.load %arg4[%c0_5, %c0_6, %c0_7] : memref<1x8x32xf32, #tpu.memory_space<vmem>>, vector<1x8x32xf32>
    %5 = vector.shape_cast %4 : vector<1x8x32xf32> to vector<8x32xf32>
    %cst = arith.constant 0.176776692 : f32
    %6 = vector.broadcast %cst : f32 to vector<8x32xf32>
    %7 = arith.mulf %1, %6 : vector<8x32xf32>
    %8 = arith.truncf %7 : vector<8x32xf32> to vector<8x32xbf16>
    %9 = arith.truncf %3 : vector<8x32xf32> to vector<8x32xbf16>
    %cst_8 = arith.constant dense<0.000000e+00> : vector<8x8xf32>
    %10 = tpu.matmul %8, %9, %cst_8 {dimension_numbers = #tpu.dot_dimension_numbers<[1], [1], [0], [0], [0, 0, 1, 0], [], []>} : vector<8x32xbf16>, vector<8x32xbf16>, vector<8x8xf32> -> vector<8x8xf32>
    %cst_9 = arith.constant dense<0xFF800000> : vector<8xf32>
    %11 = vector.multi_reduction <maximumf>, %10, %cst_9 [1] : vector<8x8xf32> to vector<8xf32>
    %12 = vector.shape_cast %11 : vector<8xf32> to vector<8x1xf32>
    %13 = vector.broadcast %12 : vector<8x1xf32> to vector<8x8xf32>
    %14 = arith.subf %10, %13 : vector<8x8xf32>
    %15 = math.exp %14 : vector<8x8xf32>
    %cst_10 = arith.constant dense<0.000000e+00> : vector<8xf32>
    %16 = vector.multi_reduction <add>, %15, %cst_10 [1] : vector<8x8xf32> to vector<8xf32>
    %17 = vector.shape_cast %16 : vector<8xf32> to vector<8x1xf32>
    %18 = tpu.reciprocal %17 {approx = true} : vector<8x1xf32> -> vector<8x1xf32>
    %19 = arith.truncf %15 : vector<8x8xf32> to vector<8x8xbf16>
    %20 = arith.truncf %5 : vector<8x32xf32> to vector<8x32xbf16>
    %cst_11 = arith.constant dense<0.000000e+00> : vector<8x32xf32>
    %21 = tpu.matmul %19, %20, %cst_11 {dimension_numbers = #tpu.dot_dimension_numbers<[1], [0], [0], [1], [0, 0, 1, 1], [], []>} : vector<8x8xbf16>, vector<8x32xbf16>, vector<8x32xf32> -> vector<8x32xf32>
    %22 = vector.broadcast %18 : vector<8x1xf32> to vector<8x32xf32>
    %23 = arith.mulf %21, %22 : vector<8x32xf32>
    %c0_12 = arith.constant 0 : index
    %c0_13 = arith.constant 0 : index
    %c0_14 = arith.constant 0 : index
    %24 = vector.load %arg5[%c0_12, %c0_13, %c0_14] : memref<1x8x32xf32, #tpu.memory_space<vmem>>, vector<1x8x32xf32>
    %25 = vector.shape_cast %24 : vector<1x8x32xf32> to vector<8x32xf32>
    %26 = vector.shape_cast %23 : vector<8x32xf32> to vector<1x8x32xf32>
    tpu.vector_store %arg5[%c0_12, %c0_13, %c0_14], %26 {strides = array<i32>} : memref<1x8x32xf32, #tpu.memory_space<vmem>>, vector<1x8x32xf32>,
    %27 = vector.broadcast %18 : vector<8x1xf32> to vector<8x8xf32>
    %28 = arith.mulf %15, %27 : vector<8x8xf32>
    %c0_15 = arith.constant 0 : index
    %c0_16 = arith.constant 0 : index
    %c0_17 = arith.constant 0 : index
    %29 = vector.load %arg6[%c0_15, %c0_16, %c0_17] : memref<1x8x8xf32, #tpu.memory_space<vmem>>, vector<1x8x8xf32>
    %30 = vector.shape_cast %29 : vector<1x8x8xf32> to vector<8x8xf32>
    %31 = vector.shape_cast %28 : vector<8x8xf32> to vector<1x8x8xf32>
    tpu.vector_store %arg6[%c0_15, %c0_16, %c0_17], %31 {strides = array<i32>} : memref<1x8x8xf32, #tpu.memory_space<vmem>>, vector<1x8x8xf32>,
    return
  }
  func.func @transform_0(%arg0: i32, %arg1: i32) -> (i32, i32, i32) {
    %c0_i32 = arith.constant 0 : i32
    %c0_i32_0 = arith.constant 0 : i32
    return %arg0, %arg1, %c0_i32 : i32, i32, i32
  }
  func.func @transform_1(%arg0: i32, %arg1: i32) -> (i32, i32, i32) {
    %c0_i32 = arith.constant 0 : i32
    %c0_i32_0 = arith.constant 0 : i32
    %c0_i32_1 = arith.constant 0 : i32
    return %arg0, %c0_i32, %c0_i32_0 : i32, i32, i32
  }
  func.func @transform_2(%arg0: i32, %arg1: i32) -> (i32, i32, i32) {
    %c0_i32 = arith.constant 0 : i32
    %c0_i32_0 = arith.constant 0 : i32
    %c0_i32_1 = arith.constant 0 : i32
    return %arg0, %c0_i32, %c0_i32_0 : i32, i32, i32
  }
  func.func @transform_3(%arg0: i32, %arg1: i32) -> (i32, i32, i32) {
    %c0_i32 = arith.constant 0 : i32
    %c0_i32_0 = arith.constant 0 : i32
    return %arg0, %arg1, %c0_i32 : i32, i32, i32
  }
  func.func @transform_4(%arg0: i32, %arg1: i32) -> (i32, i32, i32) {
    %c0_i32 = arith.constant 0 : i32
    %c0_i32_0 = arith.constant 0 : i32
    return %arg0, %arg1, %c0_i32 : i32, i32, i32
  }
}

</mosaic_0001>

<llo_original>
// kernel: attention.1
$region0: #{attention.1}
  #allocation0 [shape = 'u32[]', space=smem, size = 0x4, offset = 0x4, fixed_abs, tag = 'smem constant byte address 0x4 - core index']
  #allocation1 [shape = 'u32[144,128]{1,0:T(1,128)}', space=vmem, size = 0x12000, scoped, tag = 'internal scratch']
  %s0 = inlined_call_operand.hbm [shape: f32[2,8,32], index: 0, kind: input, shape index: {}]
  %s1 = inlined_call_operand.hbm [shape: f32[2,8,32], index: 1, kind: input, shape index: {}]
  %s2 = inlined_call_operand.hbm [shape: f32[2,8,32], index: 2, kind: input, shape index: {}]
  %s3 = inlined_call_operand.hbm [shape: f32[2,8,32], index: 3, kind: output, shape index: {0}]
  %s4 = inlined_call_operand.hbm [shape: f32[2,8,8], index: 4, kind: output, shape index: {1}]
  %5 = xla_tuple %s3, %s4
  %s6 = sld [smem:[#allocation0]]
  $region65: #{attention.1} parent=0
    _
  %s8 = ssub.s32 1, %s6
  %s9 = scalar_select 0, %s8, %s6
  $region1: #{attention.1} parent=0
    #allocation2 [shape = 'u8[8192]{0}', space=vmem, size = 0x2000, scoped, tag = 'input window, operand 0']
    #allocation3 [shape = 's32[2]{0}', space=sflag, size = 0x8, scoped, tag = 'scoped memory for attention.1']
    #allocation4 [shape = 's32[2]{0}', space=sflag, size = 0x8, scoped, tag = 'scoped memory for attention.1']
    #allocation5 [shape = 'u8[8192]{0}', space=vmem, size = 0x2000, scoped, tag = 'input window, operand 1']
    #allocation6 [shape = 's32[2]{0}', space=sflag, size = 0x8, scoped, tag = 'scoped memory for attention.1']
    #allocation7 [shape = 'u8[8192]{0}', space=vmem, size = 0x2000, scoped, tag = 'input window, operand 2']
    #allocation8 [shape = 'u8[8192]{0}', space=vmem, size = 0x2000, scoped, tag = 'output window, operand 0']
    #allocation9 [shape = 'u8[8192]{0}', space=vmem, size = 0x2000, scoped, tag = 'output window, operand 1']
    #allocation10 [shape = 's32[2]{0}', space=sflag, size = 0x8, scoped, tag = 'scoped memory for attention.1']
    %10 = vsyncpa [#allocation3], 0
    %s11 = scalar_lea.sflag [#allocation3], 1
    %12 = vsyncpa %s11, 0
    %13 = vsyncpa [#allocation6], 0
    %s14 = scalar_lea.sflag [#allocation6], 1
    %15 = vsyncpa %s14, 0
    %16 = vsyncpa [#allocation4], 0
    %s17 = scalar_lea.sflag [#allocation4], 1
    %18 = vsyncpa %s17, 0
    %19 = vsyncpa [#allocation10], 0
    %s20 = scalar_lea.sflag [#allocation10], 1
    %21 = vsyncpa %s20, 0
    loop: start=0, step=1, limit=4
    $region2: #{attention.1} parent=1 // loop_pre_header
      _
    $region3: #{attention.1} parent=1 // loop_header
      %s23 = sphi 0, %s27
      %p24 = scmp.ge.s32.totalorder %s23, 4
      %s30 = sphi 0, %s42
      %s31 = sphi 0, %s38
      %s32 = sphi 0, %s30
      %s33 = sphi 0, %s31
      %s34 = sphi 0, %s32
      %s35 = sphi 0, %s33
      %s47 = sphi 0, %s49
      %s50 = sphi 0, %s47
      %s51 = sphi 0, %s50
      %s67 = sphi 0, %s51
      %s73 = sphi 0, %s75
      %s76 = sphi 0, %s73
      %s77 = sphi 0, %s76
      %s93 = sphi 0, %s77
      %s99 = sphi 0, %s101
      %s102 = sphi 0, %s99
      %s103 = sphi 0, %s102
      %s119 = sphi 0, %s103
      %s127 = sphi 0, %s129
      %s130 = sphi 0, %s127
      %s131 = sphi 0, %s130
      %s147 = sphi 0, %s131
      %s155 = sphi 0, %s157
      %s158 = sphi 0, %s155
      %s159 = sphi 0, %s158
      %s175 = sphi 0, %s159
    $region4: #{attention.1} parent=1 // loop_header_branch
      %26 = sbr.rel (%p24) target = $region8
    $region5: #{attention.1} parent=1 // loop_body
      %s28 = ssub.s32 %s23, 1
      %s29 = ssub.s32 %s23, 2
      %s36 = sadd.s32 1, %s31
      %p37 = scmp.ge.s32.totalorder %s36, 1
      %s38 = scalar_select %p37, 0, %s36
      %s39 = sadd.s32 1, %s30
      %s40 = scalar_select %p37, %s39, %s30
      %p41 = scmp.ge.s32.totalorder %s40, 2
      %s42 = scalar_select %p41, 0, %s40
      %s43 = ssub.s32 %s30, %s42
      %s44 = ssub.s32 %s31, %s38
      %s45 = sor.u32 %s43, %s44
      %p46 = scmp.eq.s32.totalorder %s45, 0
      %s48 = sadd.s32 %s47, 1
      %s49 = scalar_select %p46, %s47, %s48
      %p52 = pneg %p46
      %p53 = scmp.eq.s32.totalorder %s23, 1
      %p54 = por %p52, %p53
      %p55 = scmp.ne.s32.totalorder %s47, %s50
      %p56 = scmp.eq.s32.totalorder %s23, 0
      %p57 = por %p55, %p56
      %p58 = scmp.ne.s32.totalorder %s47, %s50
      %p59 = scmp.eq.s32.totalorder %s28, 1
      %p60 = por %p58, %p59
      %p61 = scmp.ne.s32.totalorder %s50, %s51
      %p62 = scmp.eq.s32.totalorder %s28, 0
      %p63 = por %p61, %p62
      %p64 = scmp.ne.s32.totalorder %s50, %s51
      %p65 = scmp.eq.s32.totalorder %s29, 1
      %p66 = por %p64, %p65
      %p68 = scmp.ne.s32.totalorder %s51, %s67
      %p69 = scmp.eq.s32.totalorder %s29, 0
      %p70 = por %p68, %p69
      %s71 = ssub.s32 %s30, %s42
      %p72 = scmp.eq.s32.totalorder %s71, 0
      %s74 = sadd.s32 %s73, 1
      %s75 = scalar_select %p72, %s73, %s74
      %p78 = pneg %p72
      %p79 = scmp.eq.s32.totalorder %s23, 1
      %p80 = por %p78, %p79
      %p81 = scmp.ne.s32.totalorder %s73, %s76
      %p82 = scmp.eq.s32.totalorder %s23, 0
      %p83 = por %p81, %p82
      %p84 = scmp.ne.s32.totalorder %s73, %s76
      %p85 = scmp.eq.s32.totalorder %s28, 1
      %p86 = por %p84, %p85
      %p87 = scmp.ne.s32.totalorder %s76, %s77
      %p88 = scmp.eq.s32.totalorder %s28, 0
      %p89 = por %p87, %p88
      %p90 = scmp.ne.s32.totalorder %s76, %s77
      %p91 = scmp.eq.s32.totalorder %s29, 1
      %p92 = por %p90, %p91
      %p94 = scmp.ne.s32.totalorder %s77, %s93
      %p95 = scmp.eq.s32.totalorder %s29, 0
      %p96 = por %p94, %p95
      %s97 = ssub.s32 %s30, %s42
      %p98 = scmp.eq.s32.totalorder %s97, 0
      %s100 = sadd.s32 %s99, 1
      %s101 = scalar_select %p98, %s99, %s100
      %p104 = pneg %p98
      %p105 = scmp.eq.s32.totalorder %s23, 1
      %p106 = por %p104, %p105
      %p107 = scmp.ne.s32.totalorder %s99, %s102
      %p108 = scmp.eq.s32.totalorder %s23, 0
      %p109 = por %p107, %p108
      %p110 = scmp.ne.s32.totalorder %s99, %s102
      %p111 = scmp.eq.s32.totalorder %s28, 1
      %p112 = por %p110, %p111
      %p113 = scmp.ne.s32.totalorder %s102, %s103
      %p114 = scmp.eq.s32.totalorder %s28, 0
      %p115 = por %p113, %p114
      %p116 = scmp.ne.s32.totalorder %s102, %s103
      %p117 = scmp.eq.s32.totalorder %s29, 1
      %p118 = por %p116, %p117
      %p120 = scmp.ne.s32.totalorder %s103, %s119
      %p121 = scmp.eq.s32.totalorder %s29, 0
      %p122 = por %p120, %p121
      %s123 = ssub.s32 %s30, %s42
      %s124 = ssub.s32 %s31, %s38
      %s125 = sor.u32 %s123, %s124
      %p126 = scmp.eq.s32.totalorder %s125, 0
      %s128 = sadd.s32 %s127, 1
      %s129 = scalar_select %p126, %s127, %s128
      %p132 = pneg %p126
      %p133 = scmp.eq.s32.totalorder %s23, 1
      %p134 = por %p132, %p133
      %p135 = scmp.ne.s32.totalorder %s127, %s130
      %p136 = scmp.eq.s32.totalorder %s23, 0
      %p137 = por %p135, %p136
      %p138 = scmp.ne.s32.totalorder %s127, %s130
      %p139 = scmp.eq.s32.totalorder %s28, 1
      %p140 = por %p138, %p139
      %p141 = scmp.ne.s32.totalorder %s130, %s131
      %p142 = scmp.eq.s32.totalorder %s28, 0
      %p143 = por %p141, %p142
      %p144 = scmp.ne.s32.totalorder %s130, %s131
      %p145 = scmp.eq.s32.totalorder %s29, 1
      %p146 = por %p144, %p145
      %p148 = scmp.ne.s32.totalorder %s131, %s147
      %p149 = scmp.eq.s32.totalorder %s29, 0
      %p150 = por %p148, %p149
      %s151 = ssub.s32 %s30, %s42
      %s152 = ssub.s32 %s31, %s38
      %s153 = sor.u32 %s151, %s152
      %p154 = scmp.eq.s32.totalorder %s153, 0
      %s156 = sadd.s32 %s155, 1
      %s157 = scalar_select %p154, %s155, %s156
      %p160 = pneg %p154
      %p161 = scmp.eq.s32.totalorder %s23, 1
      %p162 = por %p160, %p161
      %p163 = scmp.ne.s32.totalorder %s155, %s158
      %p164 = scmp.eq.s32.totalorder %s23, 0
      %p165 = por %p163, %p164
      %p166 = scmp.ne.s32.totalorder %s155, %s158
      %p167 = scmp.eq.s32.totalorder %s28, 1
      %p168 = por %p166, %p167
      %p169 = scmp.ne.s32.totalorder %s158, %s159
      %p170 = scmp.eq.s32.totalorder %s28, 0
      %p171 = por %p169, %p170
      %p172 = scmp.ne.s32.totalorder %s158, %s159
      %p173 = scmp.eq.s32.totalorder %s29, 1
      %p174 = por %p172, %p173
      %p176 = scmp.ne.s32.totalorder %s159, %s175
      %p177 = scmp.eq.s32.totalorder %s29, 0
      %p178 = por %p176, %p177
      %p179 = scmp.le.s32.totalorder 1, %s23
      %p180 = scmp.lt.s32.totalorder %s23, 3
      %p181 = pnand %p179, %p180
      %p182 = pneg %p181
      // Predicated region
      $region9: #{attention.1} parent=5 // pred_check
        _
      $region10: #{attention.1} parent=5 // pred_check_branch
        %184 = sbr.rel (%p181) target = $region12
      $region11: #{attention.1} parent=5 // pred_region
        %s185 = ssub.s32 %s23, 1
      $region12: #{attention.1} parent=5 // pred_fallthru
        _
      %p186 = scmp.lt.s32.totalorder %s23, 2
      // Predicated region
      $region13: #{attention.1} parent=5 // pred_check
        %p187 = pneg %p186
      $region14: #{attention.1} parent=5 // pred_check_branch
        %189 = sbr.rel (%p187) target = $region16
      $region15: #{attention.1} parent=5 // pred_region
        // Predicated region
        $region17: #{attention.1} parent=15 // pred_check
          %p190 = pneg %p57
        $region18: #{attention.1} parent=15 // pred_check_branch
          %192 = sbr.rel (%p190) target = $region20
        $region19: #{attention.1} parent=15 // pred_region
          %s193 = sand.u32 %s47, 1
          %s194 = scalar_lea.sflag [#allocation3], %s193
          %s195 = sand.u32 %s47, 1
          %s196 = smul.addr %s195, 8
          %s197 = scalar_lea.vmem [#allocation2], %s196
          %s199 = ssub.s32 128, 128
          %200 = vsyncadd %s194, %s199
          %s201 = sadd.s32 %s31, %s30
          %s202 = smul.addr %s201, 128
          %s203 = scalar_lea.hbm %s0, %s202
          %s205 = sshll.u32 %s197, 4
          %s206 = int_to_ptr.vmem [resolvable:$true] %s205
          %208 = dma.hbm_to_vmem [thread:$0]  %s203, 128, %s206, %s194
        $region20: #{attention.1} parent=15 // pred_fallthru
          _
        // Predicated region
        $region21: #{attention.1} parent=15 // pred_check
          %p209 = pneg %p83
        $region22: #{attention.1} parent=15 // pred_check_branch
          %211 = sbr.rel (%p209) target = $region24
        $region23: #{attention.1} parent=15 // pred_region
          %s212 = sand.u32 %s23, 1
          %s213 = scalar_lea.sflag [#allocation6], %s212
          %s214 = sand.u32 %s73, 1
          %s215 = smul.addr %s214, 8
          %s216 = scalar_lea.vmem [#allocation5], %s215
          %s218 = ssub.s32 128, 128
          %219 = vsyncadd %s213, %s218
          %s220 = smul.addr %s30, 128
          %s221 = scalar_lea.hbm %s1, %s220
          %s223 = sshll.u32 %s216, 4
          %s224 = int_to_ptr.vmem [resolvable:$true] %s223
          %226 = dma.hbm_to_vmem [thread:$0]  %s221, 128, %s224, %s213
        $region24: #{attention.1} parent=15 // pred_fallthru
          _
        // Predicated region
        $region25: #{attention.1} parent=15 // pred_check
          %p227 = pneg %p109
        $region26: #{attention.1} parent=15 // pred_check_branch
          %229 = sbr.rel (%p227) target = $region28
        $region27: #{attention.1} parent=15 // pred_region
          %s230 = sand.u32 %s23, 1
          %s231 = scalar_lea.sflag [#allocation6], %s230
          %s232 = sand.u32 %s99, 1
          %s233 = smul.addr %s232, 8
          %s234 = scalar_lea.vmem [#allocation7], %s233
          %s236 = ssub.s32 128, 128
          %237 = vsyncadd %s231, %s236
          %s238 = smul.addr %s30, 128
          %s239 = scalar_lea.hbm %s2, %s238
          %s241 = sshll.u32 %s234, 4
          %s242 = int_to_ptr.vmem [resolvable:$true] %s241
          %244 = dma.hbm_to_vmem [thread:$0]  %s239, 128, %s242, %s231
        $region28: #{attention.1} parent=15 // pred_fallthru
          _
      $region16: #{attention.1} parent=5 // pred_fallthru
        _
      %p245 = scmp.le.s32.totalorder 1, %s23
      %p246 = scmp.lt.s32.totalorder %s23, 3
      %p247 = pnand %p245, %p246
      %p248 = pneg %p247
      // Predicated region
      $region29: #{attention.1} parent=5 // pred_check
        _
      $region30: #{attention.1} parent=5 // pred_check_branch
        %250 = sbr.rel (%p247) target = $region32
      $region31: #{attention.1} parent=5 // pred_region
        %s251 = ssub.s32 %s23, 1
        %s252 = sand.u32 %s50, 1
        %s253 = scalar_lea.sflag [#allocation3], %s252
        %s254 = sand.u32 %s50, 1
        %s255 = smul.addr %s254, 8
        %s256 = scalar_lea.vmem [#allocation2], %s255
        // Predicated region
        $region33: #{attention.1} parent=31 // pred_check
          %p257 = pneg %p63
        $region34: #{attention.1} parent=31 // pred_check_branch
          %259 = sbr.rel (%p257) target = $region36
        $region35: #{attention.1} parent=31 // pred_region
          %260 = dma.done %s253, 128
        $region36: #{attention.1} parent=31 // pred_fallthru
          _
        %s261 = sand.u32 %s28, 1
        %s262 = scalar_lea.sflag [#allocation6], %s261
        %s263 = sand.u32 %s76, 1
        %s264 = smul.addr %s263, 8
        %s265 = scalar_lea.vmem [#allocation5], %s264
        // Predicated region
        $region37: #{attention.1} parent=31 // pred_check
          %p266 = pneg %p89
        $region38: #{attention.1} parent=31 // pred_check_branch
          %268 = sbr.rel (%p266) target = $region40
        $region39: #{attention.1} parent=31 // pred_region
          %269 = dma.done %s262, 128
        $region40: #{attention.1} parent=31 // pred_fallthru
          _
        %s270 = sand.u32 %s28, 1
        %s271 = scalar_lea.sflag [#allocation6], %s270
        %s272 = sand.u32 %s102, 1
        %s273 = smul.addr %s272, 8
        %s274 = scalar_lea.vmem [#allocation7], %s273
        // Predicated region
        $region41: #{attention.1} parent=31 // pred_check
          %p275 = pneg %p115
        $region42: #{attention.1} parent=31 // pred_check_branch
          %277 = sbr.rel (%p275) target = $region44
        $region43: #{attention.1} parent=31 // pred_region
          %278 = dma.done %s271, 128
        $region44: #{attention.1} parent=31 // pred_fallthru
          _
        %s279 = sand.u32 %s50, 1
        %s280 = scalar_lea.sflag [#allocation3], %s279
        %s281 = sand.u32 %s50, 1
        %s282 = smul.addr %s281, 8
        %s283 = scalar_lea.vmem [#allocation2], %s282
        %p284 = pneg %p63
        %p285 = pneg %p60
        %s286 = sand.u32 %s28, 1
        %s287 = scalar_lea.sflag [#allocation6], %s286
        %s288 = sand.u32 %s76, 1
        %s289 = smul.addr %s288, 8
        %s290 = scalar_lea.vmem [#allocation5], %s289
        %p291 = pneg %p89
        %p292 = pneg %p86
        %s293 = sand.u32 %s28, 1
        %s294 = scalar_lea.sflag [#allocation6], %s293
        %s295 = sand.u32 %s102, 1
        %s296 = smul.addr %s295, 8
        %s297 = scalar_lea.vmem [#allocation7], %s296
        %p298 = pneg %p115
        %p299 = pneg %p112
        %p300 = pneg %p143
        %p301 = pneg %p140
        %s302 = sand.u32 %s130, 1
        %s303 = scalar_lea.sflag [#allocation4], %s302
        %s304 = sand.u32 %s130, 1
        %s305 = smul.addr %s304, 8
        %s306 = scalar_lea.vmem [#allocation8], %s305
        %p307 = pneg %p171
        %p308 = pneg %p168
        %s309 = sand.u32 %s158, 1
        %s310 = scalar_lea.sflag [#allocation10], %s309
        %s311 = sand.u32 %s158, 1
        %s312 = smul.addr %s311, 8
        %s313 = scalar_lea.vmem [#allocation9], %s312
        %v315 = vld [vmem:[%s256] sm:$0xff]
        %v316 = vld [vmem:[%s265] sm:$0xff]
        %v317 = vld [vmem:[%s274] sm:$0xff]
        %v318 = vmul.f32 %v315, 0.17677669
        %v319 = vpack.c.bf16 %v318, %v318
        %v320 = vpack.c.bf16 %v316, %v316
        %vm321 = vcmask 261120
        %v323 = vsel %vm321, %v319, 0
        %v326 = vsel %vm321, %v320, 0
        %328 = vmatprep.subr.bf16.mxu0 0
        %329 = vmatpush1.bf16.xpose.msra.mxu0 %v326
        %330 = vmatprep.subr.bf16.mxu0 0
        %331 = vmatpush1.bf16.xpose.msra.mxu0 0
        %332 = vmatprep.subr.bf16.mxu0 0
        %333 = vmatpush1.bf16.xpose.msra.mxu0 0
        %334 = vmatprep.subr.bf16.mxu0 0
        %335 = vmatpush1.bf16.xpose.msra.mxu0 0
        %336 = vmatprep.subr.bf16.mxu0 0
        %337 = vmatpush1.bf16.xpose.msra.mxu0 0
        %338 = vmatprep.subr.bf16.mxu0 0
        %339 = vmatpush1.bf16.xpose.msra.mxu0 0
        %340 = vmatprep.subr.bf16.mxu0 0
        %341 = vmatpush1.bf16.xpose.msra.mxu0 0
        %342 = vmatprep.subr.bf16.mxu0 0
        %343 = vmatpush1.bf16.xpose.msra.mxu0 0
        %344 = vmatprep.subr.bf16.mxu0 0
        %345 = vmatpush1.bf16.xpose.msra.mxu0 0
        %346 = vmatprep.subr.bf16.mxu0 0
        %347 = vmatpush1.bf16.xpose.msra.mxu0 0
        %348 = vmatprep.subr.bf16.mxu0 0
        %349 = vmatpush1.bf16.xpose.msra.mxu0 0
        %350 = vmatprep.subr.bf16.mxu0 0
        %351 = vmatpush1.bf16.xpose.msra.mxu0 0
        %352 = vmatprep.subr.bf16.mxu0 0
        %353 = vmatpush1.bf16.xpose.msra.mxu0 0
        %354 = vmatprep.subr.bf16.mxu0 0
        %355 = vmatpush1.bf16.xpose.msra.mxu0 0
        %356 = vmatprep.subr.bf16.mxu0 0
        %357 = vmatpush1.bf16.xpose.msra.mxu0 0
        %358 = vmatprep.subr.bf16.mxu0 0
        %359 = vmatpush1.bf16.xpose.msra.mxu0 0
        %360 = vmatprep.mubr.bf16.mxu0 0
        %361 = vmatmul.mubr.bf16.gmra.mrb[0].mxu0 %v323
        %v362 = vpop.f32.mrb[0].mxu0
        %v363 = vadd.f32 0.0, %v362
        %v364 = vpop.f32.mrb[0].mxu0
        %v365 = vpop.f32.mrb[0].mxu0
        %v366 = vpop.f32.mrb[0].mxu0
        %367 = vdwg.mxu0
        %vm368 = vcmask 64512
        %v369 = vsel %vm368, %v363, -inf
        %370 = vmax.xlane.f32.xlu0 %v369
        %v371 = vpop.xlane.xlu0 %370
        %v372 = vsub.f32 %v363, %v371
        %v373 = vmul.f32 %v372, 1.442695
        %v374 = vpow.pop %v373
        %v375 = vsel %vm368, %v374, 0.0
        %376 = vadd.xlane.f32.xlu0 %v375
        %v377 = vpop.xlane.xlu0 %376
        %v378 = vrcp.pop %v377
        %v379 = vpack.c.bf16 %v374, %v374
        %v380 = vpack.c.bf16 %v317, %v317
        %v382 = vsel %vm368, %v379, 0
        %vm384 = vcmask 1043456
        %v386 = vsel %vm384, %v380, 0
        %388 = vmatprep.subr.bf16.mxu0 0
        %389 = vmatpush1.bf16.msra.mxu0 %v386
        %390 = vmatprep.subr.bf16.mxu0 0
        %391 = vmatpush1.bf16.msra.mxu0 0
        %392 = vmatprep.subr.bf16.mxu0 0
        %393 = vmatpush1.bf16.msra.mxu0 0
        %394 = vmatprep.subr.bf16.mxu0 0
        %395 = vmatpush1.bf16.msra.mxu0 0
        %396 = vmatprep.subr.bf16.mxu0 0
        %397 = vmatpush1.bf16.msra.mxu0 0
        %398 = vmatprep.subr.bf16.mxu0 0
        %399 = vmatpush1.bf16.msra.mxu0 0
        %400 = vmatprep.subr.bf16.mxu0 0
        %401 = vmatpush1.bf16.msra.mxu0 0
        %402 = vmatprep.subr.bf16.mxu0 0
        %403 = vmatpush1.bf16.msra.mxu0 0
        %404 = vmatprep.subr.bf16.mxu0 0
        %405 = vmatpush1.bf16.msra.mxu0 0
        %406 = vmatprep.subr.bf16.mxu0 0
        %407 = vmatpush1.bf16.msra.mxu0 0
        %408 = vmatprep.subr.bf16.mxu0 0
        %409 = vmatpush1.bf16.msra.mxu0 0
        %410 = vmatprep.subr.bf16.mxu0 0
        %411 = vmatpush1.bf16.msra.mxu0 0
        %412 = vmatprep.subr.bf16.mxu0 0
        %413 = vmatpush1.bf16.msra.mxu0 0
        %414 = vmatprep.subr.bf16.mxu0 0
        %415 = vmatpush1.bf16.msra.mxu0 0
        %416 = vmatprep.subr.bf16.mxu0 0
        %417 = vmatpush1.bf16.msra.mxu0 0
        %418 = vmatprep.subr.bf16.mxu0 0
        %419 = vmatpush1.bf16.msra.mxu0 0
        %420 = vmatprep.mubr.bf16.mxu0 0
        %421 = vmatmul.mubr.bf16.gmra.mrb[0].mxu0 %v382
        %v422 = vpop.f32.mrb[0].mxu0
        %v423 = vadd.f32 0.0, %v422
        %v424 = vpop.f32.mrb[0].mxu0
        %v425 = vpop.f32.mrb[0].mxu0
        %v426 = vpop.f32.mrb[0].mxu0
        %427 = vdwg.mxu0
        %v428 = vmul.f32 %v423, %v378
        %429 = vst.msk [vmem:[%s306] sm:$0xff] %vm321, %v428
        %v430 = vmul.f32 %v374, %v378
        %431 = vst.msk [vmem:[%s313] sm:$0xff] %vm368, %v430
        %s432 = sand.u32 %s130, 1
        %s433 = scalar_lea.sflag [#allocation4], %s432
        %s434 = sand.u32 %s130, 1
        %s435 = smul.addr %s434, 8
        %s436 = scalar_lea.vmem [#allocation8], %s435
        %s437 = sand.u32 %s158, 1
        %s438 = scalar_lea.sflag [#allocation10], %s437
        %s439 = sand.u32 %s158, 1
        %s440 = smul.addr %s439, 8
        %s441 = scalar_lea.vmem [#allocation9], %s440
        // Predicated region
        $region45: #{attention.1} parent=31 // pred_check
          %p442 = pneg %p140
        $region46: #{attention.1} parent=31 // pred_check_branch
          %444 = sbr.rel (%p442) target = $region48
        $region47: #{attention.1} parent=31 // pred_region
          %s446 = ssub.s32 128, 128
          %447 = vsyncadd %s433, %s446
          %s448 = sadd.s32 %s33, %s32
          %s449 = smul.addr %s448, 128
          %s450 = scalar_lea.hbm %s3, %s449
          %s452 = sshll.u32 %s436, 4
          %s453 = int_to_ptr.vmem [resolvable:$true] %s452
          %455 = dma.vmem_to_hbm [thread:$0]  %s453, 128, %s450, %s433
        $region48: #{attention.1} parent=31 // pred_fallthru
          _
        // Predicated region
        $region49: #{attention.1} parent=31 // pred_check
          %p456 = pneg %p168
        $region50: #{attention.1} parent=31 // pred_check_branch
          %458 = sbr.rel (%p456) target = $region52
        $region51: #{attention.1} parent=31 // pred_region
          %s460 = ssub.s32 128, 128
          %461 = vsyncadd %s438, %s460
          %s462 = sadd.s32 %s33, %s32
          %s463 = smul.addr %s462, 128
          %s464 = scalar_lea.hbm %s4, %s463
          %s466 = sshll.u32 %s441, 4
          %s467 = int_to_ptr.vmem [resolvable:$true] %s466
          %469 = dma.vmem_to_hbm [thread:$0]  %s467, 128, %s464, %s438
        $region52: #{attention.1} parent=31 // pred_fallthru
          _
      $region32: #{attention.1} parent=5 // pred_fallthru
        _
      %p470 = scmp.le.s32.totalorder 2, %s23
      // Predicated region
      $region53: #{attention.1} parent=5 // pred_check
        %p471 = pneg %p470
      $region54: #{attention.1} parent=5 // pred_check_branch
        %473 = sbr.rel (%p471) target = $region56
      $region55: #{attention.1} parent=5 // pred_region
        %s474 = ssub.s32 %s23, 2
        // Predicated region
        $region57: #{attention.1} parent=55 // pred_check
          %p475 = pneg %p146
        $region58: #{attention.1} parent=55 // pred_check_branch
          %477 = sbr.rel (%p475) target = $region60
        $region59: #{attention.1} parent=55 // pred_region
          %s478 = sand.u32 %s131, 1
          %s479 = scalar_lea.sflag [#allocation4], %s478
          %s480 = sand.u32 %s131, 1
          %s481 = smul.addr %s480, 8
          %s482 = scalar_lea.vmem [#allocation8], %s481
          %483 = dma.done %s479, 128
        $region60: #{attention.1} parent=55 // pred_fallthru
          _
        // Predicated region
        $region61: #{attention.1} parent=55 // pred_check
          %p484 = pneg %p174
        $region62: #{attention.1} parent=55 // pred_check_branch
          %486 = sbr.rel (%p484) target = $region64
        $region63: #{attention.1} parent=55 // pred_region
          %s487 = sand.u32 %s159, 1
          %s488 = scalar_lea.sflag [#allocation10], %s487
          %s489 = sand.u32 %s159, 1
          %s490 = smul.addr %s489, 8
          %s491 = scalar_lea.vmem [#allocation9], %s490
          %492 = dma.done %s488, 128
        $region64: #{attention.1} parent=55 // pred_fallthru
          _
      $region56: #{attention.1} parent=5 // pred_fallthru
        _
    $region6: #{attention.1} parent=1 // loop_footer
      %s27 = sadd.s32 1, %s23
    $region7: #{attention.1} parent=1 // loop_footer_branch
      %22 = sbr.rel target = $region3
    $region8: #{attention.1} parent=1 // loop_exit
      _
    %493 = vsyncpa [#allocation3], 1
    %s494 = scalar_lea.sflag [#allocation3], 1
    %495 = vsyncpa %s494, 1
    %496 = vsyncpa [#allocation6], 1
    %s497 = scalar_lea.sflag [#allocation6], 1
    %498 = vsyncpa %s497, 1
    %499 = vsyncpa [#allocation4], 1
    %s500 = scalar_lea.sflag [#allocation4], 1
    %501 = vsyncpa %s500, 1
    %502 = vsyncpa [#allocation10], 1
    %s503 = scalar_lea.sflag [#allocation10], 1
    %504 = vsyncpa %s503, 1

</llo_original>
